<compile_context>
chip_gen: v7x
topology: tpu7x:2x2x1
jax: 0.10.0
libtpu: 0.0.40
codegen_flags: <defaults>
</compile_context>

<pallas_src>
import functools

import jax
import jax.numpy as jnp
import numpy as np
from jax.experimental import pallas as pl
from jax.experimental.pallas import tpu as pltpu


def _onehot_gather(ids_col, table_ref):
    """Gather rows of table (V, H) at ids (TS, 1) -> (TS, H) via an MXU matmul.

    One-hot is built in (TS, V) layout with a lane-broadcast compare, so the
    matmul is the canonical (TS,V) @ (V,H) form with no transposes.
    """
    V = table_ref.shape[0]
    TS = ids_col.shape[0]
    iota_v = jax.lax.broadcasted_iota(jnp.int32, (TS, V), 1)
    onehot = (iota_v == ids_col).astype(jnp.float32)           # (TS, V)
    return jnp.dot(onehot, table_ref[...],
                   preferred_element_type=jnp.float32)         # (TS, H)


def bert_embeddings_kernel(tt_ref, pos_ref, feat_ref, type_tab_ref, pos_tab_ref,
                           gamma_ref, beta_ref, out_ref, *, eps, use_position):
    feats = feat_ref[0]                                        # (TS, H) f32
    tt_ids = tt_ref[0]                                         # (TS, 1) int32

    emb = _onehot_gather(tt_ids, type_tab_ref) + feats
    if use_position:                                           # static flag
        pos_ids = pos_ref[0]                                   # (TS, 1) int32
        emb = emb + _onehot_gather(pos_ids, pos_tab_ref)

    # LayerNorm over H (f32 elementwise, biased variance, eps inside rsqrt).
    mu = jnp.mean(emb, axis=-1, keepdims=True)
    var = jnp.mean((emb - mu) ** 2, axis=-1, keepdims=True)
    yn = (emb - mu) * jax.lax.rsqrt(var + eps)
    out_ref[0] = yn * gamma_ref[...] + beta_ref[...]
    # dropout = identity (eval / inference mode)


def bert_embeddings(features, token_type_ids=None, position_ids=None, *,
                    params, eps=1e-12, seq_tile=None):
    """Pallas forward of BertEmbeddings.

    features: (B, S, H) f32; token_type_ids / position_ids: (B, S) int32 or None.
    (`input_ids` in the original module is only used to default token_type_ids
    to zeros; we mirror that by defaulting to zeros when None.)
    """
    B, S, H = features.shape
    if token_type_ids is None:
        token_type_ids = jnp.zeros((B, S), dtype=jnp.int32)
    use_position = position_ids is not None
    if position_ids is None:
        position_ids = jnp.zeros((B, S), dtype=jnp.int32)      # passed but unused

    TS = S if seq_tile is None else seq_tile
    assert S % TS == 0, "seq_tile must divide S"

    # ids as (B, S, 1) columns so the kernel sees a (TS, 1) column per block.
    tt3 = token_type_ids.reshape(B, S, 1).astype(jnp.int32)
    pos3 = position_ids.reshape(B, S, 1).astype(jnp.int32)

    T = params["type_table"].shape[0]
    P = params["pos_table"].shape[0]

    kernel = functools.partial(bert_embeddings_kernel, eps=eps,
                               use_position=use_position)

    return pl.pallas_call(
        kernel,
        out_shape=jax.ShapeDtypeStruct((B, S, H), jnp.float32),
        grid_spec=pltpu.PrefetchScalarGridSpec(
            num_scalar_prefetch=0,
            grid=(B, S // TS),
            in_specs=[
                pl.BlockSpec((1, TS, 1), lambda b, s: (b, s, 0)),   # token_type_ids
                pl.BlockSpec((1, TS, 1), lambda b, s: (b, s, 0)),   # position_ids
                pl.BlockSpec((1, TS, H), lambda b, s: (b, s, 0)),   # features
                pl.BlockSpec((T, H), lambda b, s: (0, 0)),          # type table
                pl.BlockSpec((P, H), lambda b, s: (0, 0)),          # position table
                pl.BlockSpec((1, H), lambda b, s: (0, 0)),          # ln gamma
                pl.BlockSpec((1, H), lambda b, s: (0, 0)),          # ln beta
            ],
            out_specs=pl.BlockSpec((1, TS, H), lambda b, s: (b, s, 0)),
        ),
        compiler_params=pltpu.CompilerParams(
            dimension_semantics=("parallel", "parallel")),
    )(tt3, pos3, features, params["type_table"], params["pos_table"],
      params["gamma"], params["beta"])


def bert_embeddings_ref(features, token_type_ids, position_ids, params, eps=1e-12):
    """Pure-JAX reference mirroring the PyTorch forward (dropout = identity)."""
    emb = params["type_table"][token_type_ids] + features
    if position_ids is not None:
        emb = params["pos_table"][position_ids] + emb
    mu = jnp.mean(emb, axis=-1, keepdims=True)
    var = jnp.mean((emb - mu) ** 2, axis=-1, keepdims=True)
    return (emb - mu) / jnp.sqrt(var + eps) * params["gamma"][0] + params["beta"][0]


if __name__ == "__main__":
    B, S, H = 2, 8, 32
    type_vocab_size = 2
    max_position_embeddings = 16
    eps = 1e-12

    key = jax.random.PRNGKey(0)
    ks = jax.random.split(key, 6)
    params = {
        "type_table": (0.05 * jax.random.normal(ks[0], (type_vocab_size, H))).astype(jnp.float32),
        "pos_table": (0.05 * jax.random.normal(ks[1], (max_position_embeddings, H))).astype(jnp.float32),
        "gamma": (1.0 + 0.1 * jax.random.normal(ks[2], (1, H))).astype(jnp.float32),
        "beta": (0.1 * jax.random.normal(ks[3], (1, H))).astype(jnp.float32),
    }
    features = jax.random.normal(ks[4], (B, S, H), dtype=jnp.float32)
    token_type_ids = jax.random.randint(ks[5], (B, S), 0, type_vocab_size, dtype=jnp.int32)
    position_ids = jnp.broadcast_to(jnp.arange(S, dtype=jnp.int32), (B, S))

    # Branch 1: position_ids provided (pos + type + features, then LN).
    out1 = bert_embeddings(features, token_type_ids, position_ids, params=params, eps=eps)
    out1 = jax.block_until_ready(out1)
    ref1 = bert_embeddings_ref(features, token_type_ids, position_ids, params, eps)
    np.testing.assert_allclose(np.asarray(out1), np.asarray(ref1), rtol=1e-5, atol=1e-5)

    # Branch 2: token_type_ids=None, position_ids=None (type_table[0] + features, then LN).
    out2 = bert_embeddings(features, None, None, params=params, eps=eps)
    out2 = jax.block_until_ready(out2)
    ref2 = bert_embeddings_ref(features, jnp.zeros((B, S), jnp.int32), None, params, eps)
    np.testing.assert_allclose(np.asarray(out2), np.asarray(ref2), rtol=1e-5, atol=1e-5)

    print("KERNEL_OK")
</pallas_src>

<mosaic_0001>
module attributes {stable_mosaic.version = 11 : i64} {
  func.func @bert_embeddings_kernel(%arg0: i32, %arg1: i32, %arg2: memref<1x8x1xi32, #tpu.memory_space<vmem>>, %arg3: memref<1x8x1xi32, #tpu.memory_space<vmem>>, %arg4: memref<1x8x32xf32, #tpu.memory_space<vmem>>, %arg5: memref<2x32xf32, #tpu.memory_space<vmem>>, %arg6: memref<16x32xf32, #tpu.memory_space<vmem>>, %arg7: memref<1x32xf32, #tpu.memory_space<vmem>>, %arg8: memref<1x32xf32, #tpu.memory_space<vmem>>, %arg9: memref<1x8x32xf32, #tpu.memory_space<vmem>>) attributes {dimension_semantics = [#tpu.dimension_semantics<parallel>, #tpu.dimension_semantics<parallel>], iteration_bounds = array<i64: 2, 1>, scalar_prefetch = 0 : i64, scratch_operands = 0 : i64, tpu.core_type = #tpu.core_type<tc>, window_params = [{transform_indices = @transform_0, window_bounds = array<i64: 1, 8, 1>}, {transform_indices = @transform_1, window_bounds = array<i64: 1, 8, 1>}, {transform_indices = @transform_2, window_bounds = array<i64: 1, 8, 32>}, {pipeline_mode = #tpu.pipeline_mode<synchronous>, transform_indices = @transform_3, window_bounds = array<i64: 2, 32>}, {pipeline_mode = #tpu.pipeline_mode<synchronous>, transform_indices = @transform_4, window_bounds = array<i64: 16, 32>}, {pipeline_mode = #tpu.pipeline_mode<synchronous>, transform_indices = @transform_5, window_bounds = array<i64: 1, 32>}, {pipeline_mode = #tpu.pipeline_mode<synchronous>, transform_indices = @transform_6, window_bounds = array<i64: 1, 32>}, {transform_indices = @transform_7, window_bounds = array<i64: 1, 8, 32>}]} {
    %c0 = arith.constant 0 : index
    %c0_0 = arith.constant 0 : index
    %c0_1 = arith.constant 0 : index
    %0 = vector.load %arg4[%c0, %c0_0, %c0_1] : memref<1x8x32xf32, #tpu.memory_space<vmem>>, vector<1x8x32xf32>
    %1 = vector.shape_cast %0 : vector<1x8x32xf32> to vector<8x32xf32>
    %c0_2 = arith.constant 0 : index
    %c0_3 = arith.constant 0 : index
    %c0_4 = arith.constant 0 : index
    %2 = vector.load %arg2[%c0_2, %c0_3, %c0_4] : memref<1x8x1xi32, #tpu.memory_space<vmem>>, vector<1x8x1xi32>
    %3 = vector.shape_cast %2 : vector<1x8x1xi32> to vector<8x1xi32>
    %4 = tpu.iota {dimensions = array<i32: 1>} : vector<8x2xi32>
    %5 = vector.broadcast %3 : vector<8x1xi32> to vector<8x2xi32>
    %6 = arith.cmpi eq, %4, %5 : vector<8x2xi32>
    %7 = arith.extui %6 : vector<8x2xi1> to vector<8x2xi32>
    %8 = arith.sitofp %7 : vector<8x2xi32> to vector<8x2xf32>
    %c0_5 = arith.constant 0 : index
    %c0_6 = arith.constant 0 : index
    %9 = vector.load %arg5[%c0_5, %c0_6] : memref<2x32xf32, #tpu.memory_space<vmem>>, vector<2x32xf32>
    %cst = arith.constant dense<0.000000e+00> : vector<8x32xf32>
    %10 = tpu.matmul %8, %9, %cst {dimension_numbers = #tpu.dot_dimension_numbers<[1], [0], [0], [1], [0, 0, 1, 1], [], []>} : vector<8x2xf32>, vector<2x32xf32>, vector<8x32xf32> -> vector<8x32xf32>
    %11 = arith.addf %10, %1 : vector<8x32xf32>
    %c0_7 = arith.constant 0 : index
    %c0_8 = arith.constant 0 : index
    %c0_9 = arith.constant 0 : index
    %12 = vector.load %arg3[%c0_7, %c0_8, %c0_9] : memref<1x8x1xi32, #tpu.memory_space<vmem>>, vector<1x8x1xi32>
    %13 = vector.shape_cast %12 : vector<1x8x1xi32> to vector<8x1xi32>
    %14 = tpu.iota {dimensions = array<i32: 1>} : vector<8x16xi32>
    %15 = vector.broadcast %13 : vector<8x1xi32> to vector<8x16xi32>
    %16 = arith.cmpi eq, %14, %15 : vector<8x16xi32>
    %17 = arith.extui %16 : vector<8x16xi1> to vector<8x16xi32>
    %18 = arith.sitofp %17 : vector<8x16xi32> to vector<8x16xf32>
    %c0_10 = arith.constant 0 : index
    %c0_11 = arith.constant 0 : index
    %19 = vector.load %arg6[%c0_10, %c0_11] : memref<16x32xf32, #tpu.memory_space<vmem>>, vector<16x32xf32>
    %cst_12 = arith.constant dense<0.000000e+00> : vector<8x32xf32>
    %20 = tpu.matmul %18, %19, %cst_12 {dimension_numbers = #tpu.dot_dimension_numbers<[1], [0], [0], [1], [0, 0, 1, 1], [], []>} : vector<8x16xf32>, vector<16x32xf32>, vector<8x32xf32> -> vector<8x32xf32>
    %21 = arith.addf %11, %20 : vector<8x32xf32>
    %cst_13 = arith.constant dense<0.000000e+00> : vector<8xf32>
    %22 = vector.multi_reduction <add>, %21, %cst_13 [1] : vector<8x32xf32> to vector<8xf32>
    %23 = vector.shape_cast %22 : vector<8xf32> to vector<8x1xf32>
    %cst_14 = arith.constant 3.200000e+01 : f32
    %24 = vector.broadcast %cst_14 : f32 to vector<8x1xf32>
    %25 = arith.divf %23, %24 : vector<8x1xf32>
    %26 = vector.broadcast %25 : vector<8x1xf32> to vector<8x32xf32>
    %27 = arith.subf %21, %26 : vector<8x32xf32>
    %28 = arith.mulf %27, %27 : vector<8x32xf32>
    %cst_15 = arith.constant dense<0.000000e+00> : vector<8xf32>
    %29 = vector.multi_reduction <add>, %28, %cst_15 [1] : vector<8x32xf32> to vector<8xf32>
    %30 = vector.shape_cast %29 : vector<8xf32> to vector<8x1xf32>
    %cst_16 = arith.constant 3.200000e+01 : f32
    %31 = vector.broadcast %cst_16 : f32 to vector<8x1xf32>
    %32 = arith.divf %30, %31 : vector<8x1xf32>
    %33 = vector.broadcast %25 : vector<8x1xf32> to vector<8x32xf32>
    %34 = arith.subf %21, %33 : vector<8x32xf32>
    %cst_17 = arith.constant 9.99999996E-13 : f32
    %35 = vector.broadcast %cst_17 : f32 to vector<8x1xf32>
    %36 = arith.addf %32, %35 : vector<8x1xf32>
    %37 = math.rsqrt %36 : vector<8x1xf32>
    %38 = vector.broadcast %37 : vector<8x1xf32> to vector<8x32xf32>
    %39 = arith.mulf %34, %38 : vector<8x32xf32>
    %c0_18 = arith.constant 0 : index
    %c0_19 = arith.constant 0 : index
    %40 = vector.load %arg7[%c0_18, %c0_19] : memref<1x32xf32, #tpu.memory_space<vmem>>, vector<1x32xf32>
    %41 = vector.broadcast %40 : vector<1x32xf32> to vector<8x32xf32>
    %42 = arith.mulf %39, %41 : vector<8x32xf32>
    %c0_20 = arith.constant 0 : index
    %c0_21 = arith.constant 0 : index
    %43 = vector.load %arg8[%c0_20, %c0_21] : memref<1x32xf32, #tpu.memory_space<vmem>>, vector<1x32xf32>
    %44 = vector.broadcast %43 : vector<1x32xf32> to vector<8x32xf32>
    %45 = arith.addf %42, %44 : vector<8x32xf32>
    %c0_22 = arith.constant 0 : index
    %c0_23 = arith.constant 0 : index
    %c0_24 = arith.constant 0 : index
    %46 = vector.load %arg9[%c0_22, %c0_23, %c0_24] : memref<1x8x32xf32, #tpu.memory_space<vmem>>, vector<1x8x32xf32>
    %47 = vector.shape_cast %46 : vector<1x8x32xf32> to vector<8x32xf32>
    %48 = vector.shape_cast %45 : vector<8x32xf32> to vector<1x8x32xf32>
    tpu.vector_store %arg9[%c0_22, %c0_23, %c0_24], %48 {strides = array<i32>} : memref<1x8x32xf32, #tpu.memory_space<vmem>>, vector<1x8x32xf32>,
    return
  }
  func.func @transform_0(%arg0: i32, %arg1: i32) -> (i32, i32, i32) {
    %c0_i32 = arith.constant 0 : i32
    %c0_i32_0 = arith.constant 0 : i32
    return %arg0, %arg1, %c0_i32 : i32, i32, i32
  }
  func.func @transform_1(%arg0: i32, %arg1: i32) -> (i32, i32, i32) {
    %c0_i32 = arith.constant 0 : i32
    %c0_i32_0 = arith.constant 0 : i32
    return %arg0, %arg1, %c0_i32 : i32, i32, i32
  }
  func.func @transform_2(%arg0: i32, %arg1: i32) -> (i32, i32, i32) {
    %c0_i32 = arith.constant 0 : i32
    %c0_i32_0 = arith.constant 0 : i32
    return %arg0, %arg1, %c0_i32 : i32, i32, i32
  }
  func.func @transform_3(%arg0: i32, %arg1: i32) -> (i32, i32) {
    %c0_i32 = arith.constant 0 : i32
    %c0_i32_0 = arith.constant 0 : i32
    %c0_i32_1 = arith.constant 0 : i32
    return %c0_i32, %c0_i32_0 : i32, i32
  }
  func.func @transform_4(%arg0: i32, %arg1: i32) -> (i32, i32) {
    %c0_i32 = arith.constant 0 : i32
    %c0_i32_0 = arith.constant 0 : i32
    %c0_i32_1 = arith.constant 0 : i32
    return %c0_i32, %c0_i32_0 : i32, i32
  }
  func.func @transform_5(%arg0: i32, %arg1: i32) -> (i32, i32) {
    %c0_i32 = arith.constant 0 : i32
    %c0_i32_0 = arith.constant 0 : i32
    %c0_i32_1 = arith.constant 0 : i32
    return %c0_i32, %c0_i32_0 : i32, i32
  }
  func.func @transform_6(%arg0: i32, %arg1: i32) -> (i32, i32) {
    %c0_i32 = arith.constant 0 : i32
    %c0_i32_0 = arith.constant 0 : i32
    %c0_i32_1 = arith.constant 0 : i32
    return %c0_i32, %c0_i32_0 : i32, i32
  }
  func.func @transform_7(%arg0: i32, %arg1: i32) -> (i32, i32, i32) {
    %c0_i32 = arith.constant 0 : i32
    %c0_i32_0 = arith.constant 0 : i32
    return %arg0, %arg1, %c0_i32 : i32, i32, i32
  }
}

</mosaic_0001>

<llo_original>
// kernel: tpu_custom_call.1
$region0: #{tpu_custom_call.1}
  #allocation0 [shape = 'u32[]', space=smem, size = 0x4, offset = 0x4, fixed_abs, tag = 'smem constant byte address 0x4 - core index']
  #allocation1 [shape = 'u32[144,128]{1,0:T(1,128)}', space=vmem, size = 0x12000, scoped, tag = 'internal scratch']
  %s0 = inlined_call_operand.vmem [shape: s32[2,8,1], index: 0, kind: input, shape index: {}]
  %s1 = inlined_call_operand.vmem [shape: s32[2,8,1], index: 1, kind: input, shape index: {}]
  %s2 = inlined_call_operand.vmem [shape: f32[2,8,32], index: 2, kind: input, shape index: {}]
  %s3 = inlined_call_operand.vmem [shape: f32[2,32], index: 3, kind: input, shape index: {}]
  %s4 = inlined_call_operand.vmem [shape: f32[16,32], index: 4, kind: input, shape index: {}]
  %s5 = inlined_call_operand.vmem [shape: f32[1,32], index: 5, kind: input, shape index: {}]
  %s6 = inlined_call_operand.vmem [shape: f32[1,32], index: 6, kind: input, shape index: {}]
  %s7 = inlined_call_operand.hbm [shape: f32[2,8,32], index: 7, kind: output, shape index: {}]
  %s8 = sld [smem:[#allocation0]]
  $region61: #{tpu_custom_call.1} parent=0
    _
  %s10 = ssub.s32 1, %s8
  %s11 = scalar_select 0, %s10, %s8
  $region1: #{tpu_custom_call.1} parent=0
    #allocation2 [shape = 'u8[8192]{0}', space=vmem, size = 0x2000, scoped, tag = 'output window, operand 0']
    #allocation3 [shape = 's32[2]{0}', space=sflag, size = 0x8, scoped, tag = 'scoped memory for tpu_custom_call.1']
    %12 = vsyncpa [#allocation3], 0
    %s13 = scalar_lea.sflag [#allocation3], 1
    %14 = vsyncpa %s13, 0
    loop: start=0, step=1, limit=4
    $region2: #{tpu_custom_call.1} parent=1 // loop_pre_header
      _
    $region3: #{tpu_custom_call.1} parent=1 // loop_header
      %s16 = sphi 0, %s20
      %p17 = scmp.ge.s32.totalorder %s16, 4
      %s23 = sphi 0, %s35
      %s24 = sphi 0, %s31
      %s25 = sphi 0, %s23
      %s26 = sphi 0, %s24
      %s27 = sphi 0, %s25
      %s28 = sphi 0, %s26
      %s40 = sphi 0, %s42
      %s43 = sphi 0, %s40
      %s44 = sphi 0, %s43
      %s60 = sphi 0, %s44
      %s68 = sphi 0, %s70
      %s71 = sphi 0, %s68
      %s72 = sphi 0, %s71
      %s88 = sphi 0, %s72
      %s96 = sphi 0, %s98
      %s99 = sphi 0, %s96
      %s100 = sphi 0, %s99
      %s116 = sphi 0, %s100
      %s120 = sphi 0, %s120
      %s122 = sphi 0, %s120
      %s123 = sphi 0, %s122
      %s137 = sphi 0, %s123
      %s141 = sphi 0, %s141
      %s143 = sphi 0, %s141
      %s144 = sphi 0, %s143
      %s158 = sphi 0, %s144
      %s162 = sphi 0, %s162
      %s164 = sphi 0, %s162
      %s165 = sphi 0, %s164
      %s179 = sphi 0, %s165
      %s183 = sphi 0, %s183
      %s185 = sphi 0, %s183
      %s186 = sphi 0, %s185
      %s200 = sphi 0, %s186
      %s208 = sphi 0, %s210
      %s211 = sphi 0, %s208
      %s212 = sphi 0, %s211
      %s228 = sphi 0, %s212
    $region4: #{tpu_custom_call.1} parent=1 // loop_header_branch
      %19 = sbr.rel (%p17) target = $region8
    $region5: #{tpu_custom_call.1} parent=1 // loop_body
      %s21 = ssub.s32 %s16, 1
      %s22 = ssub.s32 %s16, 2
      %s29 = sadd.s32 1, %s24
      %p30 = scmp.ge.s32.totalorder %s29, 1
      %s31 = scalar_select %p30, 0, %s29
      %s32 = sadd.s32 1, %s23
      %s33 = scalar_select %p30, %s32, %s23
      %p34 = scmp.ge.s32.totalorder %s33, 2
      %s35 = scalar_select %p34, 0, %s33
      %s36 = ssub.s32 %s23, %s35
      %s37 = ssub.s32 %s24, %s31
      %s38 = sor.u32 %s36, %s37
      %p39 = scmp.eq.s32.totalorder %s38, 0
      %s41 = sadd.s32 %s40, 1
      %s42 = scalar_select %p39, %s40, %s41
      %p45 = pneg %p39
      %p46 = scmp.eq.s32.totalorder %s16, 1
      %p47 = por %p45, %p46
      %p48 = scmp.ne.s32.totalorder %s40, %s43
      %p49 = scmp.eq.s32.totalorder %s16, 0
      %p50 = por %p48, %p49
      %p51 = scmp.ne.s32.totalorder %s40, %s43
      %p52 = scmp.eq.s32.totalorder %s21, 1
      %p53 = por %p51, %p52
      %p54 = scmp.ne.s32.totalorder %s43, %s44
      %p55 = scmp.eq.s32.totalorder %s21, 0
      %p56 = por %p54, %p55
      %p57 = scmp.ne.s32.totalorder %s43, %s44
      %p58 = scmp.eq.s32.totalorder %s22, 1
      %p59 = por %p57, %p58
      %p61 = scmp.ne.s32.totalorder %s44, %s60
      %p62 = scmp.eq.s32.totalorder %s22, 0
      %p63 = por %p61, %p62
      %s64 = ssub.s32 %s23, %s35
      %s65 = ssub.s32 %s24, %s31
      %s66 = sor.u32 %s64, %s65
      %p67 = scmp.eq.s32.totalorder %s66, 0
      %s69 = sadd.s32 %s68, 1
      %s70 = scalar_select %p67, %s68, %s69
      %p73 = pneg %p67
      %p74 = scmp.eq.s32.totalorder %s16, 1
      %p75 = por %p73, %p74
      %p76 = scmp.ne.s32.totalorder %s68, %s71
      %p77 = scmp.eq.s32.totalorder %s16, 0
      %p78 = por %p76, %p77
      %p79 = scmp.ne.s32.totalorder %s68, %s71
      %p80 = scmp.eq.s32.totalorder %s21, 1
      %p81 = por %p79, %p80
      %p82 = scmp.ne.s32.totalorder %s71, %s72
      %p83 = scmp.eq.s32.totalorder %s21, 0
      %p84 = por %p82, %p83
      %p85 = scmp.ne.s32.totalorder %s71, %s72
      %p86 = scmp.eq.s32.totalorder %s22, 1
      %p87 = por %p85, %p86
      %p89 = scmp.ne.s32.totalorder %s72, %s88
      %p90 = scmp.eq.s32.totalorder %s22, 0
      %p91 = por %p89, %p90
      %s92 = ssub.s32 %s23, %s35
      %s93 = ssub.s32 %s24, %s31
      %s94 = sor.u32 %s92, %s93
      %p95 = scmp.eq.s32.totalorder %s94, 0
      %s97 = sadd.s32 %s96, 1
      %s98 = scalar_select %p95, %s96, %s97
      %p101 = pneg %p95
      %p102 = scmp.eq.s32.totalorder %s16, 1
      %p103 = por %p101, %p102
      %p104 = scmp.ne.s32.totalorder %s96, %s99
      %p105 = scmp.eq.s32.totalorder %s16, 0
      %p106 = por %p104, %p105
      %p107 = scmp.ne.s32.totalorder %s96, %s99
      %p108 = scmp.eq.s32.totalorder %s21, 1
      %p109 = por %p107, %p108
      %p110 = scmp.ne.s32.totalorder %s99, %s100
      %p111 = scmp.eq.s32.totalorder %s21, 0
      %p112 = por %p110, %p111
      %p113 = scmp.ne.s32.totalorder %s99, %s100
      %p114 = scmp.eq.s32.totalorder %s22, 1
      %p115 = por %p113, %p114
      %p117 = scmp.ne.s32.totalorder %s100, %s116
      %p118 = scmp.eq.s32.totalorder %s22, 0
      %p119 = por %p117, %p118
      %s121 = sadd.s32 %s120, 1
      %p124 = scmp.eq.s32.totalorder %s16, 1
      %p125 = scmp.ne.s32.totalorder %s120, %s122
      %p126 = scmp.eq.s32.totalorder %s16, 0
      %p127 = por %p125, %p126
      %p128 = scmp.ne.s32.totalorder %s120, %s122
      %p129 = scmp.eq.s32.totalorder %s21, 1
      %p130 = por %p128, %p129
      %p131 = scmp.ne.s32.totalorder %s122, %s123
      %p132 = scmp.eq.s32.totalorder %s21, 0
      %p133 = por %p131, %p132
      %p134 = scmp.ne.s32.totalorder %s122, %s123
      %p135 = scmp.eq.s32.totalorder %s22, 1
      %p136 = por %p134, %p135
      %p138 = scmp.ne.s32.totalorder %s123, %s137
      %p139 = scmp.eq.s32.totalorder %s22, 0
      %p140 = por %p138, %p139
      %s142 = sadd.s32 %s141, 1
      %p145 = scmp.eq.s32.totalorder %s16, 1
      %p146 = scmp.ne.s32.totalorder %s141, %s143
      %p147 = scmp.eq.s32.totalorder %s16, 0
      %p148 = por %p146, %p147
      %p149 = scmp.ne.s32.totalorder %s141, %s143
      %p150 = scmp.eq.s32.totalorder %s21, 1
      %p151 = por %p149, %p150
      %p152 = scmp.ne.s32.totalorder %s143, %s144
      %p153 = scmp.eq.s32.totalorder %s21, 0
      %p154 = por %p152, %p153
      %p155 = scmp.ne.s32.totalorder %s143, %s144
      %p156 = scmp.eq.s32.totalorder %s22, 1
      %p157 = por %p155, %p156
      %p159 = scmp.ne.s32.totalorder %s144, %s158
      %p160 = scmp.eq.s32.totalorder %s22, 0
      %p161 = por %p159, %p160
      %s163 = sadd.s32 %s162, 1
      %p166 = scmp.eq.s32.totalorder %s16, 1
      %p167 = scmp.ne.s32.totalorder %s162, %s164
      %p168 = scmp.eq.s32.totalorder %s16, 0
      %p169 = por %p167, %p168
      %p170 = scmp.ne.s32.totalorder %s162, %s164
      %p171 = scmp.eq.s32.totalorder %s21, 1
      %p172 = por %p170, %p171
      %p173 = scmp.ne.s32.totalorder %s164, %s165
      %p174 = scmp.eq.s32.totalorder %s21, 0
      %p175 = por %p173, %p174
      %p176 = scmp.ne.s32.totalorder %s164, %s165
      %p177 = scmp.eq.s32.totalorder %s22, 1
      %p178 = por %p176, %p177
      %p180 = scmp.ne.s32.totalorder %s165, %s179
      %p181 = scmp.eq.s32.totalorder %s22, 0
      %p182 = por %p180, %p181
      %s184 = sadd.s32 %s183, 1
      %p187 = scmp.eq.s32.totalorder %s16, 1
      %p188 = scmp.ne.s32.totalorder %s183, %s185
      %p189 = scmp.eq.s32.totalorder %s16, 0
      %p190 = por %p188, %p189
      %p191 = scmp.ne.s32.totalorder %s183, %s185
      %p192 = scmp.eq.s32.totalorder %s21, 1
      %p193 = por %p191, %p192
      %p194 = scmp.ne.s32.totalorder %s185, %s186
      %p195 = scmp.eq.s32.totalorder %s21, 0
      %p196 = por %p194, %p195
      %p197 = scmp.ne.s32.totalorder %s185, %s186
      %p198 = scmp.eq.s32.totalorder %s22, 1
      %p199 = por %p197, %p198
      %p201 = scmp.ne.s32.totalorder %s186, %s200
      %p202 = scmp.eq.s32.totalorder %s22, 0
      %p203 = por %p201, %p202
      %s204 = ssub.s32 %s23, %s35
      %s205 = ssub.s32 %s24, %s31
      %s206 = sor.u32 %s204, %s205
      %p207 = scmp.eq.s32.totalorder %s206, 0
      %s209 = sadd.s32 %s208, 1
      %s210 = scalar_select %p207, %s208, %s209
      %p213 = pneg %p207
      %p214 = scmp.eq.s32.totalorder %s16, 1
      %p215 = por %p213, %p214
      %p216 = scmp.ne.s32.totalorder %s208, %s211
      %p217 = scmp.eq.s32.totalorder %s16, 0
      %p218 = por %p216, %p217
      %p219 = scmp.ne.s32.totalorder %s208, %s211
      %p220 = scmp.eq.s32.totalorder %s21, 1
      %p221 = por %p219, %p220
      %p222 = scmp.ne.s32.totalorder %s211, %s212
      %p223 = scmp.eq.s32.totalorder %s21, 0
      %p224 = por %p222, %p223
      %p225 = scmp.ne.s32.totalorder %s211, %s212
      %p226 = scmp.eq.s32.totalorder %s22, 1
      %p227 = por %p225, %p226
      %p229 = scmp.ne.s32.totalorder %s212, %s228
      %p230 = scmp.eq.s32.totalorder %s22, 0
      %p231 = por %p229, %p230
      %p232 = scmp.le.s32.totalorder 1, %s16
      %p233 = scmp.lt.s32.totalorder %s16, 3
      %p234 = pnand %p232, %p233
      %p235 = pneg %p234
      // Predicated region
      $region9: #{tpu_custom_call.1} parent=5 // pred_check
        _
      $region10: #{tpu_custom_call.1} parent=5 // pred_check_branch
        %237 = sbr.rel (%p234) target = $region12
      $region11: #{tpu_custom_call.1} parent=5 // pred_region
        %s238 = ssub.s32 %s16, 1
        // Predicated region
        $region13: #{tpu_custom_call.1} parent=11 // pred_check
          %p239 = pneg %p133
        $region14: #{tpu_custom_call.1} parent=11 // pred_check_branch
          %241 = sbr.rel (%p239) target = $region16
        $region15: #{tpu_custom_call.1} parent=11 // pred_region
          _
        $region16: #{tpu_custom_call.1} parent=11 // pred_fallthru
          _
        // Predicated region
        $region17: #{tpu_custom_call.1} parent=11 // pred_check
          %p242 = pneg %p154
        $region18: #{tpu_custom_call.1} parent=11 // pred_check_branch
          %244 = sbr.rel (%p242) target = $region20
        $region19: #{tpu_custom_call.1} parent=11 // pred_region
          _
        $region20: #{tpu_custom_call.1} parent=11 // pred_fallthru
          _
        // Predicated region
        $region21: #{tpu_custom_call.1} parent=11 // pred_check
          %p245 = pneg %p175
        $region22: #{tpu_custom_call.1} parent=11 // pred_check_branch
          %247 = sbr.rel (%p245) target = $region24
        $region23: #{tpu_custom_call.1} parent=11 // pred_region
          _
        $region24: #{tpu_custom_call.1} parent=11 // pred_fallthru
          _
        // Predicated region
        $region25: #{tpu_custom_call.1} parent=11 // pred_check
          %p248 = pneg %p196
        $region26: #{tpu_custom_call.1} parent=11 // pred_check_branch
          %250 = sbr.rel (%p248) target = $region28
        $region27: #{tpu_custom_call.1} parent=11 // pred_region
          _
        $region28: #{tpu_custom_call.1} parent=11 // pred_fallthru
          _
      $region12: #{tpu_custom_call.1} parent=5 // pred_fallthru
        _
      %p251 = scmp.lt.s32.totalorder %s16, 2
      // Predicated region
      $region29: #{tpu_custom_call.1} parent=5 // pred_check
        %p252 = pneg %p251
      $region30: #{tpu_custom_call.1} parent=5 // pred_check_branch
        %254 = sbr.rel (%p252) target = $region32
      $region31: #{tpu_custom_call.1} parent=5 // pred_region
        // Predicated region
        $region33: #{tpu_custom_call.1} parent=31 // pred_check
          %p255 = pneg %p50
        $region34: #{tpu_custom_call.1} parent=31 // pred_check_branch
          %257 = sbr.rel (%p255) target = $region36
        $region35: #{tpu_custom_call.1} parent=31 // pred_region
          %p258 = scmp.lt.s32.totalorder %s23, 1
          %s259 = scalar_select %p258, %s23, 1
          %p260 = scmp.lt.s32.totalorder %s24, 0
          %s261 = scalar_select %p260, %s24, 0
          %s262 = sadd.s32 %s261, %s259
          %s263 = smul.addr %s262, 8
          %s264 = scalar_lea.vmem %s0, %s263
        $region36: #{tpu_custom_call.1} parent=31 // pred_fallthru
          _
        // Predicated region
        $region37: #{tpu_custom_call.1} parent=31 // pred_check
          %p265 = pneg %p78
        $region38: #{tpu_custom_call.1} parent=31 // pred_check_branch
          %267 = sbr.rel (%p265) target = $region40
        $region39: #{tpu_custom_call.1} parent=31 // pred_region
          %p268 = scmp.lt.s32.totalorder %s23, 1
          %s269 = scalar_select %p268, %s23, 1
          %p270 = scmp.lt.s32.totalorder %s24, 0
          %s271 = scalar_select %p270, %s24, 0
          %s272 = sadd.s32 %s271, %s269
          %s273 = smul.addr %s272, 8
          %s274 = scalar_lea.vmem %s1, %s273
        $region40: #{tpu_custom_call.1} parent=31 // pred_fallthru
          _
        // Predicated region
        $region41: #{tpu_custom_call.1} parent=31 // pred_check
          %p275 = pneg %p106
        $region42: #{tpu_custom_call.1} parent=31 // pred_check_branch
          %277 = sbr.rel (%p275) target = $region44
        $region43: #{tpu_custom_call.1} parent=31 // pred_region
          %p278 = scmp.lt.s32.totalorder %s23, 1
          %s279 = scalar_select %p278, %s23, 1
          %p280 = scmp.lt.s32.totalorder %s24, 0
          %s281 = scalar_select %p280, %s24, 0
          %s282 = sadd.s32 %s281, %s279
          %s283 = smul.addr %s282, 8
          %s284 = scalar_lea.vmem %s2, %s283
        $region44: #{tpu_custom_call.1} parent=31 // pred_fallthru
          _
      $region32: #{tpu_custom_call.1} parent=5 // pred_fallthru
        _
      %p285 = scmp.le.s32.totalorder 1, %s16
      %p286 = scmp.lt.s32.totalorder %s16, 3
      %p287 = pnand %p285, %p286
      %p288 = pneg %p287
      // Predicated region
      $region45: #{tpu_custom_call.1} parent=5 // pred_check
        _
      $region46: #{tpu_custom_call.1} parent=5 // pred_check_branch
        %290 = sbr.rel (%p287) target = $region48
      $region47: #{tpu_custom_call.1} parent=5 // pred_region
        %s291 = ssub.s32 %s16, 1
        %p292 = scmp.lt.s32.totalorder %s25, 1
        %s293 = scalar_select %p292, %s25, 1
        %p294 = scmp.lt.s32.totalorder %s26, 0
        %s295 = scalar_select %p294, %s26, 0
        %s296 = sadd.s32 %s295, %s293
        %s297 = smul.addr %s296, 8
        %s298 = scalar_lea.vmem %s0, %s297
        %p299 = pneg %p56
        %p300 = pneg %p53
        %p301 = scmp.lt.s32.totalorder %s25, 1
        %s302 = scalar_select %p301, %s25, 1
        %p303 = scmp.lt.s32.totalorder %s26, 0
        %s304 = scalar_select %p303, %s26, 0
        %s305 = sadd.s32 %s304, %s302
        %s306 = smul.addr %s305, 8
        %s307 = scalar_lea.vmem %s1, %s306
        %p308 = pneg %p84
        %p309 = pneg %p81
        %p310 = scmp.lt.s32.totalorder %s25, 1
        %s311 = scalar_select %p310, %s25, 1
        %p312 = scmp.lt.s32.totalorder %s26, 0
        %s313 = scalar_select %p312, %s26, 0
        %s314 = sadd.s32 %s313, %s311
        %s315 = smul.addr %s314, 8
        %s316 = scalar_lea.vmem %s2, %s315
        %p317 = pneg %p112
        %p318 = pneg %p109
        %p319 = pneg %p133
        %p320 = pneg %p130
        %p321 = pneg %p154
        %p322 = pneg %p151
        %p323 = pneg %p175
        %p324 = pneg %p172
        %p325 = pneg %p196
        %p326 = pneg %p193
        %p327 = pneg %p224
        %p328 = pneg %p221
        %s329 = sand.u32 %s211, 1
        %s330 = scalar_lea.sflag [#allocation3], %s329
        %s331 = sand.u32 %s211, 1
        %s332 = smul.addr %s331, 8
        %s333 = scalar_lea.vmem [#allocation2], %s332
        %p334 = scmp.lt.s32.totalorder %s25, 1
        %s335 = scalar_select %p334, %s25, 1
        %p336 = scmp.lt.s32.totalorder %s26, 0
        %s337 = scalar_select %p336, %s26, 0
        %s338 = sadd.s32 %s337, %s335
        %s339 = smul.addr %s338, 8
        %s340 = scalar_lea.vmem %s0, %s339
        %p341 = scmp.lt.s32.totalorder %s25, 1
        %s342 = scalar_select %p341, %s25, 1
        %p343 = scmp.lt.s32.totalorder %s26, 0
        %s344 = scalar_select %p343, %s26, 0
        %s345 = sadd.s32 %s344, %s342
        %s346 = smul.addr %s345, 8
        %s347 = scalar_lea.vmem %s1, %s346
        %p348 = scmp.lt.s32.totalorder %s25, 1
        %s349 = scalar_select %p348, %s25, 1
        %p350 = scmp.lt.s32.totalorder %s26, 0
        %s351 = scalar_select %p350, %s26, 0
        %s352 = sadd.s32 %s351, %s349
        %s353 = smul.addr %s352, 8
        %s354 = scalar_lea.vmem %s2, %s353
        %v355 = vld [vmem:[%s354] sm:$0xff]
        %v356 = vld [vmem:[%s340] sm:$0xff]
        %v357 = vlaneseq
        %v358 = vand.u32 %v357, 127
        %359 = vset.pattern.permute.xlu0 0
        %360 = vperm.xlu0 %359, %v356
        %v361 = vpop.permute.xlu0 %360
        %vm362 = vcmp.eq.s32.totalorder %v358, %v361
        %v363 = vsel %vm362, 1, 0
        %v364 = vcvt.s32.f32 %v363
        %v365 = vld [vmem:[%s3] sm:$0x3]
        %vm366 = vcmask 15360
        %v368 = vsel %vm366, %v364, 0
        %vm370 = vcmask 1041408
        %v372 = vsel %vm370, %v365, 0
        %374 = vmatprep.subr.mxu0 0.0
        %375 = vmatpush1.msra.mxu0 %v372
        %376 = vmatprep.subr.mxu0 0.0
        %377 = vmatpush1.msra.mxu0 0.0
        %378 = vmatprep.subr.mxu0 0.0
        %379 = vmatpush1.msra.mxu0 0.0
        %380 = vmatprep.subr.mxu0 0.0
        %381 = vmatpush1.msra.mxu0 0.0
        %382 = vmatprep.subr.mxu0 0.0
        %383 = vmatpush1.msra.mxu0 0.0
        %384 = vmatprep.subr.mxu0 0.0
        %385 = vmatpush1.msra.mxu0 0.0
        %386 = vmatprep.subr.mxu0 0.0
        %387 = vmatpush1.msra.mxu0 0.0
        %388 = vmatprep.subr.mxu0 0.0
        %389 = vmatpush1.msra.mxu0 0.0
        %390 = vmatprep.subr.mxu0 0.0
        %391 = vmatpush1.msra.mxu0 0.0
        %392 = vmatprep.subr.mxu0 0.0
        %393 = vmatpush1.msra.mxu0 0.0
        %394 = vmatprep.subr.mxu0 0.0
        %395 = vmatpush1.msra.mxu0 0.0
        %396 = vmatprep.subr.mxu0 0.0
        %397 = vmatpush1.msra.mxu0 0.0
        %398 = vmatprep.subr.mxu0 0.0
        %399 = vmatpush1.msra.mxu0 0.0
        %400 = vmatprep.subr.mxu0 0.0
        %401 = vmatpush1.msra.mxu0 0.0
        %402 = vmatprep.subr.mxu0 0.0
        %403 = vmatpush1.msra.mxu0 0.0
        %404 = vmatprep.subr.mxu0 0.0
        %405 = vmatpush1.msra.mxu0 0.0
        %406 = vmatprep.subr.mxu0 0.0
        %407 = vmatpush1.msra.mxu0 0.0
        %408 = vmatprep.subr.mxu0 0.0
        %409 = vmatpush1.msra.mxu0 0.0
        %410 = vmatprep.subr.mxu0 0.0
        %411 = vmatpush1.msra.mxu0 0.0
        %412 = vmatprep.subr.mxu0 0.0
        %413 = vmatpush1.msra.mxu0 0.0
        %414 = vmatprep.subr.mxu0 0.0
        %415 = vmatpush1.msra.mxu0 0.0
        %416 = vmatprep.subr.mxu0 0.0
        %417 = vmatpush1.msra.mxu0 0.0
        %418 = vmatprep.subr.mxu0 0.0
        %419 = vmatpush1.msra.mxu0 0.0
        %420 = vmatprep.subr.mxu0 0.0
        %421 = vmatpush1.msra.mxu0 0.0
        %422 = vmatprep.subr.mxu0 0.0
        %423 = vmatpush1.msra.mxu0 0.0
        %424 = vmatprep.subr.mxu0 0.0
        %425 = vmatpush1.msra.mxu0 0.0
        %426 = vmatprep.subr.mxu0 0.0
        %427 = vmatpush1.msra.mxu0 0.0
        %428 = vmatprep.subr.mxu0 0.0
        %429 = vmatpush1.msra.mxu0 0.0
        %430 = vmatprep.subr.mxu0 0.0
        %431 = vmatpush1.msra.mxu0 0.0
        %432 = vmatprep.subr.mxu0 0.0
        %433 = vmatpush1.msra.mxu0 0.0
        %434 = vmatprep.subr.mxu0 0.0
        %435 = vmatpush1.msra.mxu0 0.0
        %436 = vmatprep.subr.mxu0 0.0
        %437 = vmatpush1.msra.mxu0 0.0
        %438 = vmatprep.mubr.f32.mxu0 0.0
        %439 = vmatmul.mubr.f32.gmra.mrb[0].mxu0 %v368
        %v440 = vpop.f32.mrb[0].mxu0
        %v441 = vadd.f32 %v355, %v440
        %v442 = vpop.f32.mrb[0].mxu0
        %443 = vdwg.mxu0
        %v444 = vld [vmem:[%s347] sm:$0xff]
        %445 = vset.pattern.permute.xlu0 0
        %446 = vperm.xlu0 %445, %v444
        %v447 = vpop.permute.xlu0 %446
        %vm448 = vcmp.eq.s32.totalorder %v358, %v447
        %v449 = vsel %vm448, 1, 0
        %v450 = vcvt.s32.f32 %v449
        %v451 = vld [vmem:[%s4] sm:$0xff]
        %v452 = vld [vmem:[%s4 + $0x8] sm:$0xff]
        %vm453 = vcmask 130048
        %v455 = vsel %vm453, %v450, 0
        %457 = vmatprep.subr.mxu0 0.0
        %458 = vmatpush1.msra.mxu0 %v451
        %459 = vmatprep.subr.mxu0 0.0
        %460 = vmatpush1.msra.mxu0 %v452
        %461 = vmatprep.subr.mxu0 0.0
        %462 = vmatpush1.msra.mxu0 0.0
        %463 = vmatprep.subr.mxu0 0.0
        %464 = vmatpush1.msra.mxu0 0.0
        %465 = vmatprep.subr.mxu0 0.0
        %466 = vmatpush1.msra.mxu0 0.0
        %467 = vmatprep.subr.mxu0 0.0
        %468 = vmatpush1.msra.mxu0 0.0
        %469 = vmatprep.subr.mxu0 0.0
        %470 = vmatpush1.msra.mxu0 0.0
        %471 = vmatprep.subr.mxu0 0.0
        %472 = vmatpush1.msra.mxu0 0.0
        %473 = vmatprep.subr.mxu0 0.0
        %474 = vmatpush1.msra.mxu0 0.0
        %475 = vmatprep.subr.mxu0 0.0
        %476 = vmatpush1.msra.mxu0 0.0
        %477 = vmatprep.subr.mxu0 0.0
        %478 = vmatpush1.msra.mxu0 0.0
        %479 = vmatprep.subr.mxu0 0.0
        %480 = vmatpush1.msra.mxu0 0.0
        %481 = vmatprep.subr.mxu0 0.0
        %482 = vmatpush1.msra.mxu0 0.0
        %483 = vmatprep.subr.mxu0 0.0
        %484 = vmatpush1.msra.mxu0 0.0
        %485 = vmatprep.subr.mxu0 0.0
        %486 = vmatpush1.msra.mxu0 0.0
        %487 = vmatprep.subr.mxu0 0.0
        %488 = vmatpush1.msra.mxu0 0.0
        %489 = vmatprep.subr.mxu0 0.0
        %490 = vmatpush1.msra.mxu0 0.0
        %491 = vmatprep.subr.mxu0 0.0
        %492 = vmatpush1.msra.mxu0 0.0
        %493 = vmatprep.subr.mxu0 0.0
        %494 = vmatpush1.msra.mxu0 0.0
        %495 = vmatprep.subr.mxu0 0.0
        %496 = vmatpush1.msra.mxu0 0.0
        %497 = vmatprep.subr.mxu0 0.0
        %498 = vmatpush1.msra.mxu0 0.0
        %499 = vmatprep.subr.mxu0 0.0
        %500 = vmatpush1.msra.mxu0 0.0
        %501 = vmatprep.subr.mxu0 0.0
        %502 = vmatpush1.msra.mxu0 0.0
        %503 = vmatprep.subr.mxu0 0.0
        %504 = vmatpush1.msra.mxu0 0.0
        %505 = vmatprep.subr.mxu0 0.0
        %506 = vmatpush1.msra.mxu0 0.0
        %507 = vmatprep.subr.mxu0 0.0
        %508 = vmatpush1.msra.mxu0 0.0
        %509 = vmatprep.subr.mxu0 0.0
        %510 = vmatpush1.msra.mxu0 0.0
        %511 = vmatprep.subr.mxu0 0.0
        %512 = vmatpush1.msra.mxu0 0.0
        %513 = vmatprep.subr.mxu0 0.0
        %514 = vmatpush1.msra.mxu0 0.0
        %515 = vmatprep.subr.mxu0 0.0
        %516 = vmatpush1.msra.mxu0 0.0
        %517 = vmatprep.subr.mxu0 0.0
        %518 = vmatpush1.msra.mxu0 0.0
        %519 = vmatprep.subr.mxu0 0.0
        %520 = vmatpush1.msra.mxu0 0.0
        %521 = vmatprep.mubr.f32.mxu0 0.0
        %522 = vmatmul.mubr.f32.gmra.mrb[0].mxu0 %v455
        %v523 = vpop.f32.mrb[0].mxu0
        %v524 = vadd.f32 0.0, %v523
        %v525 = vpop.f32.mrb[0].mxu0
        %526 = vdwg.mxu0
        %v527 = vadd.f32 %v441, %v524
        %vm528 = vcmask 261120
        %v529 = vsel %vm528, %v527, 0.0
        %530 = vadd.xlane.f32.xlu0 %v529
        %v531 = vpop.xlane.xlu0 %530
        %v532 = vrcp.pop 32.0
        %v533 = vmul.f32 %v531, %v532
        %v534 = vsub.f32 %v527, %v533
        %v535 = vmul.f32 %v534, %v534
        %v536 = vsel %vm528, %v535, 0.0
        %537 = vadd.xlane.f32.xlu0 %v536
        %v538 = vpop.xlane.xlu0 %537
        %v539 = vmul.f32 %v538, %v532
        %v540 = vadd.f32 %v539, 1e-12
        %v541 = vrsqrt.pop %v540
        %v542 = vmul.f32 %v534, %v541
        %v543 = vld [vmem:[%s5] sm:$0x1]
        %v545 = vlaneseq
        %v546 = vshrl.u32 %v545, 7
        %v547 = vsub.s32 0, %v546
        %v548 = vrot.slane %v543, %v547
        %v550 = vmul.f32 %v542, %v548
        %v551 = vld [vmem:[%s6] sm:$0x1]
        %v553 = vlaneseq
        %v554 = vshrl.u32 %v553, 7
        %v555 = vsub.s32 0, %v554
        %v556 = vrot.slane %v551, %v555
        %v558 = vadd.f32 %v550, %v556
        %559 = vst.msk [vmem:[%s333] sm:$0xff] %vm528, %v558
        %s560 = sand.u32 %s211, 1
        %s561 = scalar_lea.sflag [#allocation3], %s560
        %s562 = sand.u32 %s211, 1
        %s563 = smul.addr %s562, 8
        %s564 = scalar_lea.vmem [#allocation2], %s563
        // Predicated region
        $region49: #{tpu_custom_call.1} parent=47 // pred_check
          %p565 = pneg %p221
        $region50: #{tpu_custom_call.1} parent=47 // pred_check_branch
          %567 = sbr.rel (%p565) target = $region52
        $region51: #{tpu_custom_call.1} parent=47 // pred_region
          %s569 = ssub.s32 128, 128
          %570 = vsyncadd %s561, %s569
          %s571 = sadd.s32 %s26, %s25
          %s572 = smul.addr %s571, 128
          %s573 = scalar_lea.hbm %s7, %s572
          %s575 = sshll.u32 %s564, 4
          %s576 = int_to_ptr.vmem [resolvable:$true] %s575
          %578 = dma.vmem_to_hbm [thread:$0]  %s576, 128, %s573, %s561
        $region52: #{tpu_custom_call.1} parent=47 // pred_fallthru
          _
      $region48: #{tpu_custom_call.1} parent=5 // pred_fallthru
        _
      %p579 = scmp.le.s32.totalorder 2, %s16
      // Predicated region
      $region53: #{tpu_custom_call.1} parent=5 // pred_check
        %p580 = pneg %p579
      $region54: #{tpu_custom_call.1} parent=5 // pred_check_branch
        %582 = sbr.rel (%p580) target = $region56
      $region55: #{tpu_custom_call.1} parent=5 // pred_region
        %s583 = ssub.s32 %s16, 2
        // Predicated region
        $region57: #{tpu_custom_call.1} parent=55 // pred_check
          %p584 = pneg %p227
        $region58: #{tpu_custom_call.1} parent=55 // pred_check_branch
          %586 = sbr.rel (%p584) target = $region60
        $region59: #{tpu_custom_call.1} parent=55 // pred_region
          %s587 = sand.u32 %s212, 1
          %s588 = scalar_lea.sflag [#allocation3], %s587
          %s589 = sand.u32 %s212, 1
          %s590 = smul.addr %s589, 8
          %s591 = scalar_lea.vmem [#allocation2], %s590
          %592 = dma.done %s588, 128
        $region60: #{tpu_custom_call.1} parent=55 // pred_fallthru
          _
      $region56: #{tpu_custom_call.1} parent=5 // pred_fallthru
        _
    $region6: #{tpu_custom_call.1} parent=1 // loop_footer
      %s20 = sadd.s32 1, %s16
    $region7: #{tpu_custom_call.1} parent=1 // loop_footer_branch
      %15 = sbr.rel target = $region3
    $region8: #{tpu_custom_call.1} parent=1 // loop_exit
      _
    %593 = vsyncpa [#allocation3], 1
    %s594 = scalar_lea.sflag [#allocation3], 1
    %595 = vsyncpa %s594, 1

</llo_original>
